<compile_context>
chip_gen: v6e
topology: v6e:2x2x1
jax: 0.10.0
libtpu: 0.0.40
codegen_flags: <defaults>
</compile_context>

<pallas_src>
import jax
import jax.numpy as jnp
from jax.experimental import pallas as pl
from jax.experimental.pallas import tpu as pltpu


def _round_up(x, m):
    return (x + m - 1) // m * m


def _round_down(x, m):
    return max(m, (x // m) * m)


def _zencoder_fused_kernel(x_ref, w_ref, b_ref, mean_ref, var_ref):
    # One fused MXU matmul for both heads: [bb, in_dim] @ [in_dim, 2*z_dim].
    acc = jnp.dot(x_ref[...], w_ref[...], preferred_element_type=jnp.float32)
    acc = acc + b_ref[...]
    z = mean_ref.shape[1]
    mean_ref[...] = acc[:, :z].astype(mean_ref.dtype)
    var_ref[...] = acc[:, z:].astype(var_ref.dtype)


def fuse_zencoder_params(w_m, b_m, w_v, b_v, *, torch_layout=False):
    """Fuse the two Linear heads ONCE (call at parameter-init time, not per step).

    torch_layout=False: w_* are [in_dim, z_dim] (already transposed).
    torch_layout=True : w_* are torch nn.Linear [z_dim, in_dim] and get transposed here.
    Returns (w_fused [in_dim, 2*z_dim], b_fused [1, 2*z_dim]).
    """
    if torch_layout:
        w_m, w_v = w_m.T, w_v.T
    w_fused = jnp.concatenate([w_m, w_v], axis=1)
    b_fused = jnp.concatenate([b_m, b_v], axis=0).reshape(1, -1)
    return w_fused, b_fused


def np_z_encoder(inputs, w_fused, b_fused, *, block_b=None):
    """inputs: [B, in_dim]; w_fused: [in_dim, 2*z_dim]; b_fused: [1, 2*z_dim].
    Returns (mean, var_temp), each [B, z_dim]."""
    B, in_dim = inputs.shape
    out_dim = w_fused.shape[1]
    z_dim = out_dim // 2
    dtype = inputs.dtype
    itemsize = jnp.dtype(dtype).itemsize
    row_bytes = (in_dim + out_dim) * itemsize          # x row + both output rows

    # ---- batch tile selection --------------------------------------------------
    resident_bytes = 2 * (in_dim * out_dim + out_dim) * itemsize  # W/b (double-buffered)
    if block_b is None:
        # Target ~8 grid steps (pipelined overlap, both v7x TensorCores busy) while
        # keeping each step >= ~1 MiB of HBM traffic to amortize ~0.35 us/step.
        cand = _round_up(max(pl.cdiv(B, 8), 8), 8)
        min_rows = _round_up(max((1 << 20) // row_bytes, 8), 8)
        block_b = min(max(cand, min_rows), 8192)
    else:
        block_b = _round_up(max(int(block_b), 8), 8)

    # VMEM-aware cap: double-buffered tiles + resident fused W/b within ~24 MiB
    # (safe on v7x: 64 MiB physical, 32 MiB scoped default; v5e/v6e have headroom).
    tile_budget = (24 << 20) - resident_bytes
    max_rows = tile_budget // (2 * row_bytes)
    block_b = min(block_b, _round_down(int(max_rows), 8))
    # Never larger than the (sublane-rounded) batch itself.
    block_b = max(8, min(block_b, _round_up(B, 8)))

    grid = (pl.cdiv(B, block_b),)   # partial last block handled by Pallas masking

    # ---- VMEM budget & cost hint -------------------------------------------------
    tile_bytes = 2 * block_b * row_bytes               # double-buffered x + outputs
    vmem_limit = int(1.5 * (tile_bytes + resident_bytes))
    vmem_limit = max(vmem_limit, 32 << 20)              # never below scoped default
    vmem_limit = min(vmem_limit, 48 << 20)

    cost = pl.CostEstimate(
        flops=2 * B * in_dim * out_dim,
        transcendentals=0,
        bytes_accessed=B * row_bytes + (in_dim * out_dim + out_dim) * itemsize,
    )

    mean, var_temp = pl.pallas_call(
        _zencoder_fused_kernel,
        out_shape=(
            jax.ShapeDtypeStruct((B, z_dim), dtype),
            jax.ShapeDtypeStruct((B, z_dim), dtype),
        ),
        grid_spec=pltpu.PrefetchScalarGridSpec(
            num_scalar_prefetch=0,
            grid=grid,
            in_specs=[
                pl.BlockSpec((block_b, in_dim), lambda i: (i, 0)),   # x tile
                pl.BlockSpec((in_dim, out_dim), lambda i: (0, 0)),   # fused W (resident)
                pl.BlockSpec((1, out_dim), lambda i: (0, 0)),        # fused bias
            ],
            out_specs=[
                pl.BlockSpec((block_b, z_dim), lambda i: (i, 0)),    # mean
                pl.BlockSpec((block_b, z_dim), lambda i: (i, 0)),    # var_temp
            ],
        ),
        compiler_params=pltpu.CompilerParams(
            dimension_semantics=("parallel",),
            vmem_limit_bytes=vmem_limit,
        ),
        cost_estimate=cost,
    )(inputs, w_fused, b_fused)
    return mean, var_temp


def _reference_torch_layout(x, w_m_t, b_m, w_v_t, b_v):
    # torch nn.Linear: y = x @ W.T + b, with W stored [z_dim, in_dim].
    mean = x @ w_m_t.T + b_m
    var_temp = x @ w_v_t.T + b_v
    return mean, var_temp


if __name__ == "__main__":
    # Small shapes consistent with the module: r_dim=16 -> in_dim=32, z_dim=32.
    r_dim = 16
    in_dim = 2 * r_dim
    z_dim = 32
    batch = 20  # deliberately not a multiple of 8 to exercise partial-block masking

    key = jax.random.PRNGKey(0)
    k_x, k_wm, k_bm, k_wv, k_bv = jax.random.split(key, 5)

    bound = 1.0 / jnp.sqrt(in_dim)
    x = jax.random.normal(k_x, (batch, in_dim), dtype=jnp.float32)
    # torch nn.Linear layout: [z_dim, in_dim]
    w_m_t = jax.random.uniform(k_wm, (z_dim, in_dim), jnp.float32, -bound, bound)
    b_m = jax.random.uniform(k_bm, (z_dim,), jnp.float32, -bound, bound)
    w_v_t = jax.random.uniform(k_wv, (z_dim, in_dim), jnp.float32, -bound, bound)
    b_v = jax.random.uniform(k_bv, (z_dim,), jnp.float32, -bound, bound)

    # Fuse ONCE (parameter-init time), transposing from torch layout.
    w_fused, b_fused = fuse_zencoder_params(w_m_t, b_m, w_v_t, b_v, torch_layout=True)

    # Auto tile selection plus an explicit-tile run exercising a 2-step masked grid.
    mean, var_temp = np_z_encoder(x, w_fused, b_fused)
    jax.block_until_ready((mean, var_temp))
    mean2, var2 = np_z_encoder(x, w_fused, b_fused, block_b=16)
    jax.block_until_ready((mean2, var2))

    ref_mean, ref_var = _reference_torch_layout(x, w_m_t, b_m, w_v_t, b_v)
    assert mean.shape == (batch, z_dim) and var_temp.shape == (batch, z_dim)
    assert jnp.allclose(mean, ref_mean, atol=1e-5, rtol=1e-5)
    assert jnp.allclose(var_temp, ref_var, atol=1e-5, rtol=1e-5)
    assert jnp.allclose(mean2, ref_mean, atol=1e-5, rtol=1e-5)
    assert jnp.allclose(var2, ref_var, atol=1e-5, rtol=1e-5)

    print("KERNEL_OK")
</pallas_src>

<mosaic_0001>
module attributes {stable_mosaic.version = 11 : i64} {
  func.func @_zencoder_fused_kernel(%arg0: i32, %arg1: memref<24x32xf32, #tpu.memory_space<vmem>>, %arg2: memref<32x64xf32, #tpu.memory_space<vmem>>, %arg3: memref<1x64xf32, #tpu.memory_space<vmem>>, %arg4: memref<24x32xf32, #tpu.memory_space<vmem>>, %arg5: memref<24x32xf32, #tpu.memory_space<vmem>>) attributes {dimension_semantics = [#tpu.dimension_semantics<parallel>], iteration_bounds = array<i64: 1>, scalar_prefetch = 0 : i64, scratch_operands = 0 : i64, tpu.core_type = #tpu.core_type<tc>, window_params = [{transform_indices = @transform_0, window_bounds = array<i64: 24, 32>}, {pipeline_mode = #tpu.pipeline_mode<synchronous>, transform_indices = @transform_1, window_bounds = array<i64: 32, 64>}, {pipeline_mode = #tpu.pipeline_mode<synchronous>, transform_indices = @transform_2, window_bounds = array<i64: 1, 64>}, {transform_indices = @transform_3, window_bounds = array<i64: 24, 32>}, {transform_indices = @transform_4, window_bounds = array<i64: 24, 32>}]} {
    %c0 = arith.constant 0 : index
    %c0_0 = arith.constant 0 : index
    %0 = vector.load %arg1[%c0, %c0_0] : memref<24x32xf32, #tpu.memory_space<vmem>>, vector<24x32xf32>
    %c0_1 = arith.constant 0 : index
    %c0_2 = arith.constant 0 : index
    %1 = vector.load %arg2[%c0_1, %c0_2] : memref<32x64xf32, #tpu.memory_space<vmem>>, vector<32x64xf32>
    %cst = arith.constant dense<0.000000e+00> : vector<24x64xf32>
    %2 = tpu.matmul %0, %1, %cst {dimension_numbers = #tpu.dot_dimension_numbers<[1], [0], [0], [1], [0, 0, 1, 1], [], []>} : vector<24x32xf32>, vector<32x64xf32>, vector<24x64xf32> -> vector<24x64xf32>
    %c0_3 = arith.constant 0 : index
    %c0_4 = arith.constant 0 : index
    %3 = vector.load %arg3[%c0_3, %c0_4] : memref<1x64xf32, #tpu.memory_space<vmem>>, vector<1x64xf32>
    %4 = vector.broadcast %3 : vector<1x64xf32> to vector<24x64xf32>
    %5 = arith.addf %2, %4 : vector<24x64xf32>
    %6 = vector.extract_strided_slice %5 {offsets = [0, 0], sizes = [24, 32], strides = [1, 1]} : vector<24x64xf32> to vector<24x32xf32>
    %c0_5 = arith.constant 0 : index
    %c0_6 = arith.constant 0 : index
    %7 = vector.load %arg4[%c0_5, %c0_6] : memref<24x32xf32, #tpu.memory_space<vmem>>, vector<24x32xf32>
    tpu.vector_store %arg4[%c0_5, %c0_6], %6 {strides = array<i32>} : memref<24x32xf32, #tpu.memory_space<vmem>>, vector<24x32xf32>,
    %8 = vector.extract_strided_slice %5 {offsets = [0, 32], sizes = [24, 32], strides = [1, 1]} : vector<24x64xf32> to vector<24x32xf32>
    %c0_7 = arith.constant 0 : index
    %c0_8 = arith.constant 0 : index
    %9 = vector.load %arg5[%c0_7, %c0_8] : memref<24x32xf32, #tpu.memory_space<vmem>>, vector<24x32xf32>
    tpu.vector_store %arg5[%c0_7, %c0_8], %8 {strides = array<i32>} : memref<24x32xf32, #tpu.memory_space<vmem>>, vector<24x32xf32>,
    return
  }
  func.func @transform_0(%arg0: i32) -> (i32, i32) {
    %c0_i32 = arith.constant 0 : i32
    %c0_i32_0 = arith.constant 0 : i32
    return %arg0, %c0_i32 : i32, i32
  }
  func.func @transform_1(%arg0: i32) -> (i32, i32) {
    %c0_i32 = arith.constant 0 : i32
    %c0_i32_0 = arith.constant 0 : i32
    %c0_i32_1 = arith.constant 0 : i32
    return %c0_i32, %c0_i32_0 : i32, i32
  }
  func.func @transform_2(%arg0: i32) -> (i32, i32) {
    %c0_i32 = arith.constant 0 : i32
    %c0_i32_0 = arith.constant 0 : i32
    %c0_i32_1 = arith.constant 0 : i32
    return %c0_i32, %c0_i32_0 : i32, i32
  }
  func.func @transform_3(%arg0: i32) -> (i32, i32) {
    %c0_i32 = arith.constant 0 : i32
    %c0_i32_0 = arith.constant 0 : i32
    return %arg0, %c0_i32 : i32, i32
  }
  func.func @transform_4(%arg0: i32) -> (i32, i32) {
    %c0_i32 = arith.constant 0 : i32
    %c0_i32_0 = arith.constant 0 : i32
    return %arg0, %c0_i32 : i32, i32
  }
}

</mosaic_0001>

<llo_original>
// kernel: tpu_custom_call.1
$region0: #{tpu_custom_call.1}
  #allocation0 [shape = 'u32[]', space=smem, size = 0x4, offset = 0x4, fixed_abs, tag = 'smem constant byte address 0x4 - core index']
  #allocation1 [shape = 'u32[144,128]{1,0:T(1,128)}', space=vmem, size = 0x12000, scoped, tag = 'internal scratch']
  %s0 = inlined_call_operand.hbm [shape: f32[20,32], index: 0, kind: input, shape index: {}]
  %s1 = inlined_call_operand.hbm [shape: f32[32,64], index: 1, kind: input, shape index: {}]
  %s2 = inlined_call_operand.vmem [shape: f32[1,64], index: 2, kind: input, shape index: {}]
  %s3 = inlined_call_operand.hbm [shape: f32[20,32], index: 3, kind: output, shape index: {0}]
  %s4 = inlined_call_operand.hbm [shape: f32[20,32], index: 4, kind: output, shape index: {1}]
  %5 = xla_tuple %s3, %s4
  %s6 = sld [smem:[#allocation0]]
  $region38: #{tpu_custom_call.1} parent=0
    _
  %s8 = ssub.s32 1, %s6
  %s9 = scalar_select 0, %s8, %s6
  $region1: #{tpu_custom_call.1} parent=0
    #allocation2 [shape = 'u8[12288]{0}', space=vmem, size = 0x3000, scoped, tag = 'input window, operand 0, single buffered']
    #allocation3 [shape = 's32[1]{0}', space=sflag, size = 0x4, scoped, tag = 'scoped memory for tpu_custom_call.1']
    #allocation4 [shape = 's32[1]{0}', space=sflag, size = 0x4, scoped, tag = 'scoped memory for tpu_custom_call.1']
    #allocation5 [shape = 'u8[16384]{0}', space=vmem, size = 0x4000, scoped, tag = 'input window, operand 1, single buffered']
    #allocation6 [shape = 's32[1]{0}', space=sflag, size = 0x4, scoped, tag = 'scoped memory for tpu_custom_call.1']
    #allocation7 [shape = 'u8[12288]{0}', space=vmem, size = 0x3000, scoped, tag = 'output window, operand 0, single buffered']
    #allocation8 [shape = 'u8[12288]{0}', space=vmem, size = 0x3000, scoped, tag = 'output window, operand 1, single buffered']
    #allocation9 [shape = 's32[1]{0}', space=sflag, size = 0x4, scoped, tag = 'scoped memory for tpu_custom_call.1']
    %10 = vsyncpa [#allocation3], 0
    %11 = vsyncpa [#allocation6], 0
    %12 = vsyncpa [#allocation4], 0
    %13 = vsyncpa [#allocation9], 0
    // Predicated region
    $region2: #{tpu_custom_call.1} parent=1 // pred_check
      _
    $region3: #{tpu_custom_call.1} parent=1 // pred_check_branch
      %15 = sbr.rel (0) target = $region5
    $region4: #{tpu_custom_call.1} parent=1 // pred_region
      %s17 = ssub.s32 384, 384
      %18 = vsyncadd [#allocation3], %s17
      %s19 = sshll.u32 [#allocation2], 4
      %s20 = int_to_ptr.vmem [resolvable:$true] %s19
      %25 = dma.hbm_to_vmem [thread:$0]  %s0, 384, %s20, [#allocation3], 128, 128, 8
    $region5: #{tpu_custom_call.1} parent=1 // pred_fallthru
      _
    // Predicated region
    $region6: #{tpu_custom_call.1} parent=1 // pred_check
      _
    $region7: #{tpu_custom_call.1} parent=1 // pred_check_branch
      %27 = sbr.rel (0) target = $region9
    $region8: #{tpu_custom_call.1} parent=1 // pred_region
      %s29 = ssub.s32 512, 512
      %30 = vsyncadd [#allocation6], %s29
      %s31 = sshll.u32 [#allocation5], 4
      %s32 = int_to_ptr.vmem [resolvable:$true] %s31
      %37 = dma.hbm_to_vmem [thread:$0]  %s1, 512, %s32, [#allocation6], 128, 128, 8
    $region9: #{tpu_custom_call.1} parent=1 // pred_fallthru
      _
    // Predicated region
    $region10: #{tpu_custom_call.1} parent=1 // pred_check
      _
    $region11: #{tpu_custom_call.1} parent=1 // pred_check_branch
      %39 = sbr.rel (0) target = $region13
    $region12: #{tpu_custom_call.1} parent=1 // pred_region
      _
    $region13: #{tpu_custom_call.1} parent=1 // pred_fallthru
      _
    // Predicated region
    $region14: #{tpu_custom_call.1} parent=1 // pred_check
      _
    $region15: #{tpu_custom_call.1} parent=1 // pred_check_branch
      %41 = sbr.rel (0) target = $region17
    $region16: #{tpu_custom_call.1} parent=1 // pred_region
      %42 = dma.done [#allocation3], 384
    $region17: #{tpu_custom_call.1} parent=1 // pred_fallthru
      _
    // Predicated region
    $region18: #{tpu_custom_call.1} parent=1 // pred_check
      _
    $region19: #{tpu_custom_call.1} parent=1 // pred_check_branch
      %44 = sbr.rel (0) target = $region21
    $region20: #{tpu_custom_call.1} parent=1 // pred_region
      %45 = dma.done [#allocation6], 512
    $region21: #{tpu_custom_call.1} parent=1 // pred_fallthru
      _
    %v46 = vld [vmem:[#allocation2] sm:$0xff]
    %v47 = vld [vmem:[#allocation2 + $0x8] sm:$0xff]
    %v48 = vld [vmem:[#allocation2 + $0x10] sm:$0xff]
    %v49 = vld [vmem:[#allocation5] sm:$0xff]
    %v50 = vld [vmem:[#allocation5 + $0x8] sm:$0xff]
    %v51 = vld [vmem:[#allocation5 + $0x10] sm:$0xff]
    %v52 = vld [vmem:[#allocation5 + $0x18] sm:$0xff]
    %v53 = vld [vmem:[%s2] sm:$0x1]
    %v55 = vlaneseq
    %v56 = vshrl.u32 %v55, 7
    %v57 = vsub.s32 0, %v56
    %v58 = vrot.slane %v53, %v57
    %vm60 = vcmask 261120
    %v62 = vsel %vm60, %v46, 0
    %v65 = vsel %vm60, %v47, 0
    %v68 = vsel %vm60, %v48, 0
    %70 = vmatprep.subr.mxu0 0.0
    %71 = vmatpush1.msra.mxu0 0.0
    %72 = vmatprep.subr.mxu0 0.0
    %73 = vmatpush1.msra.mxu0 0.0
    %74 = vmatprep.subr.mxu0 0.0
    %75 = vmatpush1.msra.mxu0 0.0
    %76 = vmatprep.subr.mxu0 0.0
    %77 = vmatpush1.msra.mxu0 0.0
    %78 = vmatprep.subr.mxu0 0.0
    %79 = vmatpush1.msra.mxu0 0.0
    %80 = vmatprep.subr.mxu0 0.0
    %81 = vmatpush1.msra.mxu0 0.0
    %82 = vmatprep.subr.mxu0 0.0
    %83 = vmatpush1.msra.mxu0 0.0
    %84 = vmatprep.subr.mxu0 0.0
    %85 = vmatpush1.msra.mxu0 0.0
    %86 = vmatprep.subr.mxu0 0.0
    %87 = vmatpush1.msra.mxu0 0.0
    %88 = vmatprep.subr.mxu0 0.0
    %89 = vmatpush1.msra.mxu0 0.0
    %90 = vmatprep.subr.mxu0 0.0
    %91 = vmatpush1.msra.mxu0 0.0
    %92 = vmatprep.subr.mxu0 0.0
    %93 = vmatpush1.msra.mxu0 0.0
    %94 = vmatprep.subr.mxu0 0.0
    %95 = vmatpush1.msra.mxu0 %v52
    %96 = vmatprep.subr.mxu0 0.0
    %97 = vmatpush1.msra.mxu0 %v51
    %98 = vmatprep.subr.mxu0 0.0
    %99 = vmatpush1.msra.mxu0 %v50
    %100 = vmatprep.subr.mxu0 0.0
    %101 = vmatpush1.msra.mxu0 %v49
    %102 = vmatprep.subr.mxu0 0.0
    %103 = vmatpush2.msra.mxu0 0.0
    %104 = vmatprep.subr.mxu0 0.0
    %105 = vmatpush2.msra.mxu0 0.0
    %106 = vmatprep.subr.mxu0 0.0
    %107 = vmatpush2.msra.mxu0 0.0
    %108 = vmatprep.subr.mxu0 0.0
    %109 = vmatpush2.msra.mxu0 0.0
    %110 = vmatprep.subr.mxu0 0.0
    %111 = vmatpush2.msra.mxu0 0.0
    %112 = vmatprep.subr.mxu0 0.0
    %113 = vmatpush2.msra.mxu0 0.0
    %114 = vmatprep.subr.mxu0 0.0
    %115 = vmatpush2.msra.mxu0 0.0
    %116 = vmatprep.subr.mxu0 0.0
    %117 = vmatpush2.msra.mxu0 0.0
    %118 = vmatprep.subr.mxu0 0.0
    %119 = vmatpush2.msra.mxu0 0.0
    %120 = vmatprep.subr.mxu0 0.0
    %121 = vmatpush2.msra.mxu0 0.0
    %122 = vmatprep.subr.mxu0 0.0
    %123 = vmatpush2.msra.mxu0 0.0
    %124 = vmatprep.subr.mxu0 0.0
    %125 = vmatpush2.msra.mxu0 0.0
    %126 = vmatprep.subr.mxu0 0.0
    %127 = vmatpush2.msra.mxu0 0.0
    %128 = vmatprep.subr.mxu0 0.0
    %129 = vmatpush2.msra.mxu0 0.0
    %130 = vmatprep.subr.mxu0 0.0
    %131 = vmatpush2.msra.mxu0 0.0
    %132 = vmatprep.subr.mxu0 0.0
    %133 = vmatpush2.msra.mxu0 0.0
    %134 = vmatprep.mubr.f32.mxu0 0.0
    %135 = vmatmul.mubr.f32.gmra.mxu0 %v62
    %v136 = vpop.f32.mrf.mxu0
    %v137 = vadd.f32 %v58, %v136
    %v138 = vpop.f32.mrf.mxu0
    %139 = vmatprep.mubr.f32.mxu0 0.0
    %140 = vmatmul.mubr.f32.gmra.mxu0 %v65
    %v141 = vpop.f32.mrf.mxu0
    %v142 = vadd.f32 %v58, %v141
    %v143 = vpop.f32.mrf.mxu0
    %144 = vmatprep.mubr.f32.mxu0 0.0
    %145 = vmatmul.mubr.f32.gmra.mxu0 %v68
    %v146 = vpop.f32.mrf.mxu0
    %v147 = vadd.f32 %v58, %v146
    %v148 = vpop.f32.mrf.mxu0
    %149 = vdwg.mxu0
    %150 = vst.msk [vmem:[#allocation7] sm:$0xff] %vm60, %v137
    %151 = vst.msk [vmem:[#allocation7 + $0x8] sm:$0xff] %vm60, %v142
    %152 = vst.msk [vmem:[#allocation7 + $0x10] sm:$0xff] %vm60, %v147
    %156 = vrot.lane.b32.xlu0 %v137, 96
    %v157 = vpop.permute.xlu0 %156
    %158 = vrot.lane.b32.xlu0 %v142, 96
    %v159 = vpop.permute.xlu0 %158
    %160 = vrot.lane.b32.xlu0 %v147, 96
    %v161 = vpop.permute.xlu0 %160
    %165 = vst.msk [vmem:[#allocation8] sm:$0xff] %vm60, %v157
    %166 = vst.msk [vmem:[#allocation8 + $0x8] sm:$0xff] %vm60, %v159
    %167 = vst.msk [vmem:[#allocation8 + $0x10] sm:$0xff] %vm60, %v161
    // Predicated region
    $region22: #{tpu_custom_call.1} parent=1 // pred_check
      _
    $region23: #{tpu_custom_call.1} parent=1 // pred_check_branch
      %169 = sbr.rel (0) target = $region25
    $region24: #{tpu_custom_call.1} parent=1 // pred_region
      %s171 = ssub.s32 384, 384
      %172 = vsyncadd [#allocation4], %s171
      %s173 = sshll.u32 [#allocation7], 4
      %s174 = int_to_ptr.vmem [resolvable:$true] %s173
      %179 = dma.vmem_to_hbm [thread:$0]  %s174, 384, %s3, [#allocation4], 128, 128, 8
    $region25: #{tpu_custom_call.1} parent=1 // pred_fallthru
      _
    // Predicated region
    $region26: #{tpu_custom_call.1} parent=1 // pred_check
      _
    $region27: #{tpu_custom_call.1} parent=1 // pred_check_branch
      %181 = sbr.rel (0) target = $region29
    $region28: #{tpu_custom_call.1} parent=1 // pred_region
      %s183 = ssub.s32 384, 384
      %184 = vsyncadd [#allocation9], %s183
      %s185 = sshll.u32 [#allocation8], 4
      %s186 = int_to_ptr.vmem [resolvable:$true] %s185
      %191 = dma.vmem_to_hbm [thread:$0]  %s186, 384, %s4, [#allocation9], 128, 128, 8
    $region29: #{tpu_custom_call.1} parent=1 // pred_fallthru
      _
    // Predicated region
    $region30: #{tpu_custom_call.1} parent=1 // pred_check
      _
    $region31: #{tpu_custom_call.1} parent=1 // pred_check_branch
      %193 = sbr.rel (0) target = $region33
    $region32: #{tpu_custom_call.1} parent=1 // pred_region
      %194 = dma.done [#allocation4], 384
    $region33: #{tpu_custom_call.1} parent=1 // pred_fallthru
      _
    // Predicated region
    $region34: #{tpu_custom_call.1} parent=1 // pred_check
      _
    $region35: #{tpu_custom_call.1} parent=1 // pred_check_branch
      %196 = sbr.rel (0) target = $region37
    $region36: #{tpu_custom_call.1} parent=1 // pred_region
      %197 = dma.done [#allocation9], 384
    $region37: #{tpu_custom_call.1} parent=1 // pred_fallthru
      _
    %198 = vsyncpa [#allocation3], 1
    %199 = vsyncpa [#allocation6], 1
    %200 = vsyncpa [#allocation4], 1
    %201 = vsyncpa [#allocation9], 1

</llo_original>
